<compile_context>
chip_gen: v6e
topology: v6e:2x2x1
jax: 0.10.0
libtpu: 0.0.40
codegen_flags: <defaults>
</compile_context>

<pallas_src>
import jax
import jax.numpy as jnp
from jax.experimental import pallas as pl
from jax.experimental.pallas import tpu as pltpu


def _pick_lane_block(hw: int, max_lanes: int = 2048) -> int:
    """Largest multiple of 128 that divides hw (capped at max_lanes), else full hw."""
    if hw % 128 != 0:
        return hw
    blk = 128
    cand = 128
    while cand <= min(hw, max_lanes):
        if hw % cand == 0:
            blk = cand
        cand += 128
    return blk


def _make_pool_gate_kernel(inv_hw: float):
    def pool_gate_kernel(x_ref, w1_ref, b1_ref, w2_ref, b2_ref, gate_ref, acc_ref):
        # x_ref: (N, C, HW_blk)   acc_ref: (N, C) f32 scratch   gate_ref: (N, C) f32
        j = pl.program_id(0)

        @pl.when(j == 0)
        def _():
            acc_ref[...] = jnp.zeros_like(acc_ref)

        # Accumulate spatial sum in f32 (only the reduction pass upcasts).
        acc_ref[...] += jnp.sum(x_ref[...].astype(jnp.float32), axis=-1)

        @pl.when(j == pl.num_programs(0) - 1)
        def _():
            pooled = acc_ref[...] * inv_hw                                # (N, C)
            # Linear(C, C//4) + LeakyReLU(0.3)
            h = jnp.dot(pooled, w1_ref[...].astype(jnp.float32),
                        preferred_element_type=jnp.float32)
            h = h + b1_ref[...].astype(jnp.float32)                       # (N, C4)
            h = jnp.where(h > 0, h, 0.3 * h)
            # Linear(C//4, C) + Sigmoid
            g = jnp.dot(h, w2_ref[...].astype(jnp.float32),
                        preferred_element_type=jnp.float32)
            g = g + b2_ref[...].astype(jnp.float32)                       # (N, C)
            gate_ref[...] = jax.nn.sigmoid(g)

    return pool_gate_kernel


def scale_kernel(gate_ref, x_ref, o_ref):
    # gate_ref: (N*C, 1) f32   x_ref/o_ref: (N*C, HW_blk) in x's native dtype
    o_ref[...] = x_ref[...] * gate_ref[...].astype(x_ref.dtype)


def squeeze_excite(x_nchw, w1, b1, w2, b2, *, max_lanes=2048,
                   vmem_limit_bytes=32 * 1024 * 1024):
    N, C, H, W = x_nchw.shape
    HW = H * W
    C4 = w1.shape[1]
    R = N * C
    itemsize = jnp.dtype(x_nchw.dtype).itemsize

    lblk = _pick_lane_block(HW, max_lanes)
    n_tiles = HW // lblk

    # ---------- Pass 1: pooled-sum reduction + gate MLP (grid over HW tiles) ----------
    x3 = x_nchw.reshape(N, C, HW)
    b1_2d = b1.reshape(1, C4)
    b2_2d = b2.reshape(1, C)

    gate = pl.pallas_call(
        _make_pool_gate_kernel(1.0 / HW),
        out_shape=jax.ShapeDtypeStruct((N, C), jnp.float32),
        grid_spec=pltpu.PrefetchScalarGridSpec(
            num_scalar_prefetch=0,
            grid=(n_tiles,),
            in_specs=[
                pl.BlockSpec((N, C, lblk), lambda j: (0, 0, j)),  # x tile
                pl.BlockSpec((C, C4), lambda j: (0, 0)),          # w1 (resident)
                pl.BlockSpec((1, C4), lambda j: (0, 0)),          # b1
                pl.BlockSpec((C4, C), lambda j: (0, 0)),          # w2
                pl.BlockSpec((1, C), lambda j: (0, 0)),           # b2
            ],
            out_specs=pl.BlockSpec((N, C), lambda j: (0, 0)),     # gate (accumulator-style)
            scratch_shapes=[pltpu.VMEM((N, C), jnp.float32)],
        ),
        compiler_params=pltpu.CompilerParams(
            dimension_semantics=("arbitrary",),                   # reduction axis
            vmem_limit_bytes=vmem_limit_bytes,
        ),
        cost_estimate=pl.CostEstimate(
            flops=int(x3.size) + 4 * N * C * C4,
            transcendentals=N * C,
            bytes_accessed=int(x3.size) * itemsize
            + 4 * (C * C4 + C4 + C4 * C + C) + 4 * N * C,
        ),
    )(x3, w1, b1_2d, w2, b2_2d)

    # ---------- Pass 2: elementwise scale (parallel grid, lane-dense tiles) ----------
    x2 = x_nchw.reshape(R, HW)
    gate_col = gate.reshape(R, 1)

    out2 = pl.pallas_call(
        scale_kernel,
        out_shape=jax.ShapeDtypeStruct((R, HW), x_nchw.dtype),
        grid_spec=pltpu.PrefetchScalarGridSpec(
            num_scalar_prefetch=0,
            grid=(n_tiles,),
            in_specs=[
                pl.BlockSpec((R, 1), lambda j: (0, 0)),           # gate (tiny, resident)
                pl.BlockSpec((R, lblk), lambda j: (0, j)),        # x tile
            ],
            out_specs=pl.BlockSpec((R, lblk), lambda j: (0, j)),
        ),
        compiler_params=pltpu.CompilerParams(
            dimension_semantics=("parallel",),                    # megacore on v7x
            vmem_limit_bytes=vmem_limit_bytes,
        ),
        cost_estimate=pl.CostEstimate(
            flops=int(x2.size),
            transcendentals=0,
            bytes_accessed=2 * int(x2.size) * itemsize + 4 * R,
        ),
    )(gate_col, x2)

    return out2.reshape(N, C, H, W)


def reference(x_nchw, w1, b1, w2, b2):
    pooled = jnp.mean(x_nchw.astype(jnp.float32), axis=(2, 3))    # (N, C)
    h = pooled @ w1 + b1
    h = jnp.where(h > 0, h, 0.3 * h)
    g = jax.nn.sigmoid(h @ w2 + b2)
    return x_nchw * g[:, :, None, None].astype(x_nchw.dtype)


if __name__ == "__main__":
    # Small shapes consistent with the module: batch=2, channels=8, spatial=16
    # (channelsize == spatial size -> AvgPool yields a 1x1 map).
    N, C, S = 2, 8, 16
    C4 = C // 4

    key = jax.random.PRNGKey(0)
    kx, k1, k2, k3, k4 = jax.random.split(key, 5)
    x = jax.random.normal(kx, (N, C, S, S), dtype=jnp.float32)

    # nn.Linear weights stored pre-transposed to (in, out) for row-vector matmul.
    w1 = jax.random.normal(k1, (C, C4), dtype=jnp.float32) * 0.1
    b1 = jax.random.normal(k2, (C4,), dtype=jnp.float32) * 0.1
    w2 = jax.random.normal(k3, (C4, C), dtype=jnp.float32) * 0.1
    b2 = jax.random.normal(k4, (C,), dtype=jnp.float32) * 0.1

    out = squeeze_excite(x, w1, b1, w2, b2)
    out = jax.block_until_ready(out)

    ref = reference(x, w1, b1, w2, b2)
    assert out.shape == (N, C, S, S)
    assert jnp.allclose(out, ref, atol=1e-5, rtol=1e-5), "mismatch vs reference"

    print("KERNEL_OK")
</pallas_src>

<mosaic_0001>
module attributes {stable_mosaic.version = 11 : i64} {
  func.func @pool_gate_kernel(%arg0: i32, %arg1: memref<2x8x256xf32, #tpu.memory_space<vmem>>, %arg2: memref<8x2xf32, #tpu.memory_space<vmem>>, %arg3: memref<1x2xf32, #tpu.memory_space<vmem>>, %arg4: memref<2x8xf32, #tpu.memory_space<vmem>>, %arg5: memref<1x8xf32, #tpu.memory_space<vmem>>, %arg6: memref<2x8xf32, #tpu.memory_space<vmem>>, %arg7: memref<2x8xf32, #tpu.memory_space<vmem>>) attributes {dimension_semantics = [#tpu.dimension_semantics<arbitrary>], iteration_bounds = array<i64: 1>, scalar_prefetch = 0 : i64, scratch_operands = 1 : i64, tpu.core_type = #tpu.core_type<tc>, window_params = [{transform_indices = @transform_0, window_bounds = array<i64: 2, 8, 256>}, {pipeline_mode = #tpu.pipeline_mode<synchronous>, transform_indices = @transform_1, window_bounds = array<i64: 8, 2>}, {pipeline_mode = #tpu.pipeline_mode<synchronous>, transform_indices = @transform_2, window_bounds = array<i64: 1, 2>}, {pipeline_mode = #tpu.pipeline_mode<synchronous>, transform_indices = @transform_3, window_bounds = array<i64: 2, 8>}, {pipeline_mode = #tpu.pipeline_mode<synchronous>, transform_indices = @transform_4, window_bounds = array<i64: 1, 8>}, {pipeline_mode = #tpu.pipeline_mode<synchronous>, transform_indices = @transform_5, window_bounds = array<i64: 2, 8>}]} {
    %c0_i32 = arith.constant 0 : i32
    %0 = arith.cmpi eq, %arg0, %c0_i32 : i32
    %1 = arith.extui %0 : i1 to i32
    %c0_i32_0 = arith.constant 0 : i32
    %2 = arith.cmpi ne, %1, %c0_i32_0 : i32
    scf.if %2 {
      %cst_9 = arith.constant 0.000000e+00 : f32
      %11 = vector.broadcast %cst_9 : f32 to vector<2x8xf32>
      %c0_10 = arith.constant 0 : index
      %c0_11 = arith.constant 0 : index
      %12 = vector.load %arg7[%c0_10, %c0_11] : memref<2x8xf32, #tpu.memory_space<vmem>>, vector<2x8xf32>
      tpu.vector_store %arg7[%c0_10, %c0_11], %11 {strides = array<i32>} : memref<2x8xf32, #tpu.memory_space<vmem>>, vector<2x8xf32>,
    } else {
    }
    %c0 = arith.constant 0 : index
    %c0_1 = arith.constant 0 : index
    %3 = vector.load %arg7[%c0, %c0_1] : memref<2x8xf32, #tpu.memory_space<vmem>>, vector<2x8xf32>
    %c0_2 = arith.constant 0 : index
    %c0_3 = arith.constant 0 : index
    %c0_4 = arith.constant 0 : index
    %4 = vector.load %arg1[%c0_2, %c0_3, %c0_4] : memref<2x8x256xf32, #tpu.memory_space<vmem>>, vector<2x8x256xf32>
    %cst = arith.constant dense<0.000000e+00> : vector<2x8xf32>
    %5 = vector.multi_reduction <add>, %4, %cst [2] : vector<2x8x256xf32> to vector<2x8xf32>
    %6 = arith.addf %3, %5 : vector<2x8xf32>
    %c0_5 = arith.constant 0 : index
    %c0_6 = arith.constant 0 : index
    %7 = vector.load %arg7[%c0_5, %c0_6] : memref<2x8xf32, #tpu.memory_space<vmem>>, vector<2x8xf32>
    tpu.vector_store %arg7[%c0_5, %c0_6], %6 {strides = array<i32>} : memref<2x8xf32, #tpu.memory_space<vmem>>, vector<2x8xf32>,
    %c0_i32_7 = arith.constant 0 : i32
    %8 = arith.cmpi eq, %arg0, %c0_i32_7 : i32
    %9 = arith.extui %8 : i1 to i32
    %c0_i32_8 = arith.constant 0 : i32
    %10 = arith.cmpi ne, %9, %c0_i32_8 : i32
    scf.if %10 {
      %c0_9 = arith.constant 0 : index
      %c0_10 = arith.constant 0 : index
      %11 = vector.load %arg7[%c0_9, %c0_10] : memref<2x8xf32, #tpu.memory_space<vmem>>, vector<2x8xf32>
      %cst_11 = arith.constant 3.906250e-03 : f32
      %12 = vector.broadcast %cst_11 : f32 to vector<2x8xf32>
      %13 = arith.mulf %11, %12 : vector<2x8xf32>
      %c0_12 = arith.constant 0 : index
      %c0_13 = arith.constant 0 : index
      %14 = vector.load %arg2[%c0_12, %c0_13] : memref<8x2xf32, #tpu.memory_space<vmem>>, vector<8x2xf32>
      %cst_14 = arith.constant dense<0.000000e+00> : vector<2x2xf32>
      %15 = tpu.matmul %13, %14, %cst_14 {dimension_numbers = #tpu.dot_dimension_numbers<[1], [0], [0], [1], [0, 0, 1, 1], [], []>} : vector<2x8xf32>, vector<8x2xf32>, vector<2x2xf32> -> vector<2x2xf32>
      %c0_15 = arith.constant 0 : index
      %c0_16 = arith.constant 0 : index
      %16 = vector.load %arg3[%c0_15, %c0_16] : memref<1x2xf32, #tpu.memory_space<vmem>>, vector<1x2xf32>
      %17 = vector.broadcast %16 : vector<1x2xf32> to vector<2x2xf32>
      %18 = arith.addf %15, %17 : vector<2x2xf32>
      %cst_17 = arith.constant 0.000000e+00 : f32
      %19 = vector.broadcast %cst_17 : f32 to vector<2x2xf32>
      %20 = arith.cmpf ogt, %18, %19 : vector<2x2xf32>
      %cst_18 = arith.constant 3.000000e-01 : f32
      %21 = vector.broadcast %cst_18 : f32 to vector<2x2xf32>
      %22 = arith.mulf %21, %18 : vector<2x2xf32>
      %23 = arith.select %20, %18, %22 : vector<2x2xi1>, vector<2x2xf32>
      %c0_19 = arith.constant 0 : index
      %c0_20 = arith.constant 0 : index
      %24 = vector.load %arg4[%c0_19, %c0_20] : memref<2x8xf32, #tpu.memory_space<vmem>>, vector<2x8xf32>
      %cst_21 = arith.constant dense<0.000000e+00> : vector<2x8xf32>
      %25 = tpu.matmul %23, %24, %cst_21 {dimension_numbers = #tpu.dot_dimension_numbers<[1], [0], [0], [1], [0, 0, 1, 1], [], []>} : vector<2x2xf32>, vector<2x8xf32>, vector<2x8xf32> -> vector<2x8xf32>
      %c0_22 = arith.constant 0 : index
      %c0_23 = arith.constant 0 : index
      %26 = vector.load %arg5[%c0_22, %c0_23] : memref<1x8xf32, #tpu.memory_space<vmem>>, vector<1x8xf32>
      %27 = vector.broadcast %26 : vector<1x8xf32> to vector<2x8xf32>
      %28 = arith.addf %25, %27 : vector<2x8xf32>
      %29 = arith.negf %28 : vector<2x8xf32>
      %30 = math.exp %29 : vector<2x8xf32>
      %cst_24 = arith.constant 1.000000e+00 : f32
      %31 = vector.broadcast %cst_24 : f32 to vector<2x8xf32>
      %32 = arith.addf %31, %30 : vector<2x8xf32>
      %33 = arith.divf %31, %32 : vector<2x8xf32>
      %c0_25 = arith.constant 0 : index
      %c0_26 = arith.constant 0 : index
      %34 = vector.load %arg6[%c0_25, %c0_26] : memref<2x8xf32, #tpu.memory_space<vmem>>, vector<2x8xf32>
      tpu.vector_store %arg6[%c0_25, %c0_26], %33 {strides = array<i32>} : memref<2x8xf32, #tpu.memory_space<vmem>>, vector<2x8xf32>,
    } else {
    }
    return
  }
  func.func @transform_0(%arg0: i32) -> (i32, i32, i32) {
    %c0_i32 = arith.constant 0 : i32
    %c0_i32_0 = arith.constant 0 : i32
    %c0_i32_1 = arith.constant 0 : i32
    return %c0_i32, %c0_i32_0, %arg0 : i32, i32, i32
  }
  func.func @transform_1(%arg0: i32) -> (i32, i32) {
    %c0_i32 = arith.constant 0 : i32
    %c0_i32_0 = arith.constant 0 : i32
    %c0_i32_1 = arith.constant 0 : i32
    return %c0_i32, %c0_i32_0 : i32, i32
  }
  func.func @transform_2(%arg0: i32) -> (i32, i32) {
    %c0_i32 = arith.constant 0 : i32
    %c0_i32_0 = arith.constant 0 : i32
    %c0_i32_1 = arith.constant 0 : i32
    return %c0_i32, %c0_i32_0 : i32, i32
  }
  func.func @transform_3(%arg0: i32) -> (i32, i32) {
    %c0_i32 = arith.constant 0 : i32
    %c0_i32_0 = arith.constant 0 : i32
    %c0_i32_1 = arith.constant 0 : i32
    return %c0_i32, %c0_i32_0 : i32, i32
  }
  func.func @transform_4(%arg0: i32) -> (i32, i32) {
    %c0_i32 = arith.constant 0 : i32
    %c0_i32_0 = arith.constant 0 : i32
    %c0_i32_1 = arith.constant 0 : i32
    return %c0_i32, %c0_i32_0 : i32, i32
  }
  func.func @transform_5(%arg0: i32) -> (i32, i32) {
    %c0_i32 = arith.constant 0 : i32
    %c0_i32_0 = arith.constant 0 : i32
    %c0_i32_1 = arith.constant 0 : i32
    return %c0_i32, %c0_i32_0 : i32, i32
  }
}

</mosaic_0001>

<llo_original>
// kernel: tpu_custom_call.1
$region0: #{tpu_custom_call.1}
  #allocation0 [shape = 'u32[]', space=smem, size = 0x4, offset = 0x4, fixed_abs, tag = 'smem constant byte address 0x4 - core index']
  #allocation1 [shape = 'u32[144,128]{1,0:T(1,128)}', space=vmem, size = 0x12000, scoped, tag = 'internal scratch']
  #allocation2 [shape = 'f32[2,8]{1,0:T(2,128)}', space=vmem, size = 0x400, scoped, tag = 'scratch operand']
  %s0 = inlined_call_operand.hbm [shape: f32[2,8,256], index: 0, kind: input, shape index: {}]
  %s1 = inlined_call_operand.vmem [shape: f32[8,2], index: 1, kind: input, shape index: {}]
  %s2 = inlined_call_operand.vmem [shape: f32[1,2], index: 2, kind: input, shape index: {}]
  %s3 = inlined_call_operand.vmem [shape: f32[2,8], index: 3, kind: input, shape index: {}]
  %s4 = inlined_call_operand.vmem [shape: f32[1,8], index: 4, kind: input, shape index: {}]
  %s5 = inlined_call_operand.hbm [shape: f32[2,8], index: 5, kind: output, shape index: {}]
  %s6 = sld [smem:[#allocation0]]
  $region42: #{tpu_custom_call.1} parent=0
    _
  %s8 = ssub.s32 1, %s6
  %s9 = scalar_select 0, %s8, %s6
  $region1: #{tpu_custom_call.1} parent=0
    #allocation3 [shape = 'u8[16384]{0}', space=vmem, size = 0x4000, scoped, tag = 'input window, operand 0, single buffered']
    #allocation4 [shape = 's32[1]{0}', space=sflag, size = 0x4, scoped, tag = 'scoped memory for tpu_custom_call.1']
    #allocation5 [shape = 's32[1]{0}', space=sflag, size = 0x4, scoped, tag = 'scoped memory for tpu_custom_call.1']
    #allocation6 [shape = 'u8[1024]{0}', space=vmem, size = 0x400, scoped, tag = 'output window, operand 0, single buffered']
    %10 = vsyncpa [#allocation4], 0
    %11 = vsyncpa [#allocation5], 0
    // Predicated region
    $region2: #{tpu_custom_call.1} parent=1 // pred_check
      _
    $region3: #{tpu_custom_call.1} parent=1 // pred_check_branch
      %13 = sbr.rel (0) target = $region5
    $region4: #{tpu_custom_call.1} parent=1 // pred_region
      %s15 = ssub.s32 512, 512
      %16 = vsyncadd [#allocation4], %s15
      %s17 = sshll.u32 [#allocation3], 4
      %s18 = int_to_ptr.vmem [resolvable:$true] %s17
      %23 = dma.hbm_to_vmem [thread:$0]  %s0, 512, %s18, [#allocation4], 256, 256, 16
    $region5: #{tpu_custom_call.1} parent=1 // pred_fallthru
      _
    // Predicated region
    $region6: #{tpu_custom_call.1} parent=1 // pred_check
      _
    $region7: #{tpu_custom_call.1} parent=1 // pred_check_branch
      %25 = sbr.rel (0) target = $region9
    $region8: #{tpu_custom_call.1} parent=1 // pred_region
      _
    $region9: #{tpu_custom_call.1} parent=1 // pred_fallthru
      _
    // Predicated region
    $region10: #{tpu_custom_call.1} parent=1 // pred_check
      _
    $region11: #{tpu_custom_call.1} parent=1 // pred_check_branch
      %27 = sbr.rel (0) target = $region13
    $region12: #{tpu_custom_call.1} parent=1 // pred_region
      _
    $region13: #{tpu_custom_call.1} parent=1 // pred_fallthru
      _
    // Predicated region
    $region14: #{tpu_custom_call.1} parent=1 // pred_check
      _
    $region15: #{tpu_custom_call.1} parent=1 // pred_check_branch
      %29 = sbr.rel (0) target = $region17
    $region16: #{tpu_custom_call.1} parent=1 // pred_region
      _
    $region17: #{tpu_custom_call.1} parent=1 // pred_fallthru
      _
    // Predicated region
    $region18: #{tpu_custom_call.1} parent=1 // pred_check
      _
    $region19: #{tpu_custom_call.1} parent=1 // pred_check_branch
      %31 = sbr.rel (0) target = $region21
    $region20: #{tpu_custom_call.1} parent=1 // pred_region
      _
    $region21: #{tpu_custom_call.1} parent=1 // pred_fallthru
      _
    // Predicated region
    $region22: #{tpu_custom_call.1} parent=1 // pred_check
      _
    $region23: #{tpu_custom_call.1} parent=1 // pred_check_branch
      %33 = sbr.rel (0) target = $region25
    $region24: #{tpu_custom_call.1} parent=1 // pred_region
      %34 = dma.done [#allocation4], 512
    $region25: #{tpu_custom_call.1} parent=1 // pred_fallthru
      _
    %p35 = scmp.eq.s32.totalorder 0, 0
    // Predicated region
    $region26: #{tpu_custom_call.1} parent=1 // pred_check
      %p36 = pneg %p35
    $region27: #{tpu_custom_call.1} parent=1 // pred_check_branch
      %38 = sbr.rel (%p36) target = $region29
    $region28: #{tpu_custom_call.1} parent=1 // pred_region
      %vm39 = vcmask 58368
      %40 = vst.msk [vmem:[#allocation2] sm:$0x3] %vm39, 0.0
    $region29: #{tpu_custom_call.1} parent=1 // pred_fallthru
      _
    %v41 = vld [vmem:[#allocation2] sm:$0x3]
    %v42 = vld [vmem:[#allocation3] sm:$0xff]
    %v43 = vld [vmem:[#allocation3 + $0x8] sm:$0xff]
    %v44 = vld [vmem:[#allocation3 + $0x10] sm:$0xff]
    %v45 = vld [vmem:[#allocation3 + $0x18] sm:$0xff]
    %v46 = vadd.f32 %v42, %v43
    %47 = vadd.xlane.f32.xlu0 %v46
    %v48 = vpop.xlane.xlu0 %47
    %v49 = vadd.f32 %v44, %v45
    %50 = vadd.xlane.f32.xlu0 %v49
    %v51 = vpop.xlane.xlu0 %50
    %v54 = vlaneseq
    %v55 = vand.u32 %v54, 127
    %v56 = vlaneseq
    %v57 = vshrl.u32 %v56, 7
    %v58 = vsub.s32 %v55, %v57
    %v59 = vrot.slane %v48, %v58
    %v60 = vlaneseq
    %v61 = vshrl.u32 %v60, 7
    %v62 = vsub.s32 %v55, %v61
    %v63 = vrot.slane %v51, %v62
    %vm64 = vcmask 1041409
    %v65 = vsel %vm64, %v63, %v59
    %v67 = vadd.f32 %v41, %v65
    %vm68 = vcmask 58368
    %69 = vst.msk [vmem:[#allocation2] sm:$0x3] %vm68, %v67
    // Predicated region
    $region30: #{tpu_custom_call.1} parent=1 // pred_check
      %p70 = pneg %p35
    $region31: #{tpu_custom_call.1} parent=1 // pred_check_branch
      %72 = sbr.rel (%p70) target = $region33
    $region32: #{tpu_custom_call.1} parent=1 // pred_region
      %v73 = vld [vmem:[#allocation2] sm:$0x3]
      %v74 = vmul.f32 %v73, 0.00390625
      %v75 = vld [vmem:[%s1] sm:$0xff]
      %v76 = vld [vmem:[%s2] sm:$0x1]
      %v78 = vlaneseq
      %v79 = vshrl.u32 %v78, 7
      %v80 = vsub.s32 0, %v79
      %v81 = vrot.slane %v76, %v80
      %vm83 = vcmask 64512
      %v85 = vsel %vm83, %v74, 0
      %87 = vmatprep.subr.mxu0 0.0
      %88 = vmatpush1.msra.mxu0 0.0
      %89 = vmatprep.subr.mxu0 0.0
      %90 = vmatpush1.msra.mxu0 0.0
      %91 = vmatprep.subr.mxu0 0.0
      %92 = vmatpush1.msra.mxu0 0.0
      %93 = vmatprep.subr.mxu0 0.0
      %94 = vmatpush1.msra.mxu0 0.0
      %95 = vmatprep.subr.mxu0 0.0
      %96 = vmatpush1.msra.mxu0 0.0
      %97 = vmatprep.subr.mxu0 0.0
      %98 = vmatpush1.msra.mxu0 0.0
      %99 = vmatprep.subr.mxu0 0.0
      %100 = vmatpush1.msra.mxu0 0.0
      %101 = vmatprep.subr.mxu0 0.0
      %102 = vmatpush1.msra.mxu0 0.0
      %103 = vmatprep.subr.mxu0 0.0
      %104 = vmatpush1.msra.mxu0 0.0
      %105 = vmatprep.subr.mxu0 0.0
      %106 = vmatpush1.msra.mxu0 0.0
      %107 = vmatprep.subr.mxu0 0.0
      %108 = vmatpush1.msra.mxu0 0.0
      %109 = vmatprep.subr.mxu0 0.0
      %110 = vmatpush1.msra.mxu0 0.0
      %111 = vmatprep.subr.mxu0 0.0
      %112 = vmatpush1.msra.mxu0 0.0
      %113 = vmatprep.subr.mxu0 0.0
      %114 = vmatpush1.msra.mxu0 0.0
      %115 = vmatprep.subr.mxu0 0.0
      %116 = vmatpush1.msra.mxu0 0.0
      %117 = vmatprep.subr.mxu0 0.0
      %118 = vmatpush1.msra.mxu0 %v75
      %119 = vmatprep.subr.mxu0 0.0
      %120 = vmatpush2.msra.mxu0 0.0
      %121 = vmatprep.subr.mxu0 0.0
      %122 = vmatpush2.msra.mxu0 0.0
      %123 = vmatprep.subr.mxu0 0.0
      %124 = vmatpush2.msra.mxu0 0.0
      %125 = vmatprep.subr.mxu0 0.0
      %126 = vmatpush2.msra.mxu0 0.0
      %127 = vmatprep.subr.mxu0 0.0
      %128 = vmatpush2.msra.mxu0 0.0
      %129 = vmatprep.subr.mxu0 0.0
      %130 = vmatpush2.msra.mxu0 0.0
      %131 = vmatprep.subr.mxu0 0.0
      %132 = vmatpush2.msra.mxu0 0.0
      %133 = vmatprep.subr.mxu0 0.0
      %134 = vmatpush2.msra.mxu0 0.0
      %135 = vmatprep.subr.mxu0 0.0
      %136 = vmatpush2.msra.mxu0 0.0
      %137 = vmatprep.subr.mxu0 0.0
      %138 = vmatpush2.msra.mxu0 0.0
      %139 = vmatprep.subr.mxu0 0.0
      %140 = vmatpush2.msra.mxu0 0.0
      %141 = vmatprep.subr.mxu0 0.0
      %142 = vmatpush2.msra.mxu0 0.0
      %143 = vmatprep.subr.mxu0 0.0
      %144 = vmatpush2.msra.mxu0 0.0
      %145 = vmatprep.subr.mxu0 0.0
      %146 = vmatpush2.msra.mxu0 0.0
      %147 = vmatprep.subr.mxu0 0.0
      %148 = vmatpush2.msra.mxu0 0.0
      %149 = vmatprep.subr.mxu0 0.0
      %150 = vmatpush2.msra.mxu0 0.0
      %151 = vmatprep.mubr.f32.mxu0 0.0
      %152 = vmatmul.mubr.f32.gmra.mxu0 %v85
      %v153 = vpop.f32.mrf.mxu0
      %v154 = vadd.f32 %v81, %v153
      %v155 = vpop.f32.mrf.mxu0
      %156 = vdwg.mxu0
      %vm157 = vcmp.gt.f32.partialorder %v154, 0.0
      %v158 = vmul.f32 %v154, 0.3
      %v159 = vsel %vm157, %v154, %v158
      %v160 = vld [vmem:[%s3] sm:$0x3]
      %v161 = vld [vmem:[%s4] sm:$0x1]
      %v163 = vlaneseq
      %v164 = vshrl.u32 %v163, 7
      %v165 = vsub.s32 0, %v164
      %v166 = vrot.slane %v161, %v165
      %vm168 = vcmask 15360
      %v170 = vsel %vm168, %v159, 0
      %vm172 = vcmask 1041408
      %v174 = vsel %vm172, %v160, 0
      %176 = vmatprep.subr.mxu0 0.0
      %177 = vmatpush1.msra.mxu0 0.0
      %178 = vmatprep.subr.mxu0 0.0
      %179 = vmatpush1.msra.mxu0 0.0
      %180 = vmatprep.subr.mxu0 0.0
      %181 = vmatpush1.msra.mxu0 0.0
      %182 = vmatprep.subr.mxu0 0.0
      %183 = vmatpush1.msra.mxu0 0.0
      %184 = vmatprep.subr.mxu0 0.0
      %185 = vmatpush1.msra.mxu0 0.0
      %186 = vmatprep.subr.mxu0 0.0
      %187 = vmatpush1.msra.mxu0 0.0
      %188 = vmatprep.subr.mxu0 0.0
      %189 = vmatpush1.msra.mxu0 0.0
      %190 = vmatprep.subr.mxu0 0.0
      %191 = vmatpush1.msra.mxu0 0.0
      %192 = vmatprep.subr.mxu0 0.0
      %193 = vmatpush1.msra.mxu0 0.0
      %194 = vmatprep.subr.mxu0 0.0
      %195 = vmatpush1.msra.mxu0 0.0
      %196 = vmatprep.subr.mxu0 0.0
      %197 = vmatpush1.msra.mxu0 0.0
      %198 = vmatprep.subr.mxu0 0.0
      %199 = vmatpush1.msra.mxu0 0.0
      %200 = vmatprep.subr.mxu0 0.0
      %201 = vmatpush1.msra.mxu0 0.0
      %202 = vmatprep.subr.mxu0 0.0
      %203 = vmatpush1.msra.mxu0 0.0
      %204 = vmatprep.subr.mxu0 0.0
      %205 = vmatpush1.msra.mxu0 0.0
      %206 = vmatprep.subr.mxu0 0.0
      %207 = vmatpush1.msra.mxu0 %v174
      %208 = vmatprep.subr.mxu0 0.0
      %209 = vmatpush2.msra.mxu0 0.0
      %210 = vmatprep.subr.mxu0 0.0
      %211 = vmatpush2.msra.mxu0 0.0
      %212 = vmatprep.subr.mxu0 0.0
      %213 = vmatpush2.msra.mxu0 0.0
      %214 = vmatprep.subr.mxu0 0.0
      %215 = vmatpush2.msra.mxu0 0.0
      %216 = vmatprep.subr.mxu0 0.0
      %217 = vmatpush2.msra.mxu0 0.0
      %218 = vmatprep.subr.mxu0 0.0
      %219 = vmatpush2.msra.mxu0 0.0
      %220 = vmatprep.subr.mxu0 0.0
      %221 = vmatpush2.msra.mxu0 0.0
      %222 = vmatprep.subr.mxu0 0.0
      %223 = vmatpush2.msra.mxu0 0.0
      %224 = vmatprep.subr.mxu0 0.0
      %225 = vmatpush2.msra.mxu0 0.0
      %226 = vmatprep.subr.mxu0 0.0
      %227 = vmatpush2.msra.mxu0 0.0
      %228 = vmatprep.subr.mxu0 0.0
      %229 = vmatpush2.msra.mxu0 0.0
      %230 = vmatprep.subr.mxu0 0.0
      %231 = vmatpush2.msra.mxu0 0.0
      %232 = vmatprep.subr.mxu0 0.0
      %233 = vmatpush2.msra.mxu0 0.0
      %234 = vmatprep.subr.mxu0 0.0
      %235 = vmatpush2.msra.mxu0 0.0
      %236 = vmatprep.subr.mxu0 0.0
      %237 = vmatpush2.msra.mxu0 0.0
      %238 = vmatprep.subr.mxu0 0.0
      %239 = vmatpush2.msra.mxu0 0.0
      %240 = vmatprep.mubr.f32.mxu0 0.0
      %241 = vmatmul.mubr.f32.gmra.mxu0 %v170
      %v242 = vpop.f32.mrf.mxu0
      %v243 = vadd.f32 %v166, %v242
      %v244 = vpop.f32.mrf.mxu0
      %245 = vdwg.mxu0
      %v246 = vxor.u32 %v243, 2147483648
      %v247 = vmul.f32 %v246, 1.442695
      %v248 = vpow.pop %v247
      %v249 = vadd.f32 %v248, 1.0
      %v250 = vrcp.pop %v249
      %v251 = vmul.f32 1.0, %v250
      %252 = vst.msk [vmem:[#allocation6] sm:$0x3] %vm68, %v251
    $region33: #{tpu_custom_call.1} parent=1 // pred_fallthru
      _
    // Predicated region
    $region34: #{tpu_custom_call.1} parent=1 // pred_check
      _
    $region35: #{tpu_custom_call.1} parent=1 // pred_check_branch
      %254 = sbr.rel (0) target = $region37
    $region36: #{tpu_custom_call.1} parent=1 // pred_region
      %s256 = ssub.s32 32, 32
      %257 = vsyncadd [#allocation5], %s256
      %s259 = sshll.u32 [#allocation6], 4
      %s260 = int_to_ptr.vmem [resolvable:$true] %s259
      %262 = dma.vmem_to_hbm [thread:$0]  %s260, 32, %s5, [#allocation5]
    $region37: #{tpu_custom_call.1} parent=1 // pred_fallthru
      _
    // Predicated region
    $region38: #{tpu_custom_call.1} parent=1 // pred_check
      _
    $region39: #{tpu_custom_call.1} parent=1 // pred_check_branch
      %264 = sbr.rel (0) target = $region41
    $region40: #{tpu_custom_call.1} parent=1 // pred_region
      %265 = dma.done [#allocation5], 32
    $region41: #{tpu_custom_call.1} parent=1 // pred_fallthru
      _
    %266 = vsyncpa [#allocation4], 1
    %267 = vsyncpa [#allocation5], 1

</llo_original>
